<compile_context>
chip_gen: v6e
topology: v6e:2x2x1
jax: 0.10.0
libtpu: 0.0.40
codegen_flags: <defaults>
</compile_context>

<pallas_src>
import jax
import jax.numpy as jnp
from jax.experimental import pallas as pl
from jax.experimental.pallas import tpu as pltpu

ALPHA = 2.0  # torch.addmm(..., alpha=2)
BETA = 3.0   # torch.addmm(..., beta=3)


# ---------------------------------------------------------------------------
# Small-shape path: single VMEM block, no grid / pipeline machinery.
# ---------------------------------------------------------------------------
def _addmm_small_kernel(bias_ref, m1_ref, w_ref, o_ref):
    # Fold ALPHA into the (M, K) m1 tile (fewer elements than the (M, N) acc);
    # ALPHA = 2.0 is a power of two, so this is exact in any float dtype.
    m1_scaled = (ALPHA * m1_ref[...]).astype(m1_ref.dtype)
    acc = jnp.dot(m1_scaled, w_ref[...], preferred_element_type=jnp.float32)
    # Scale the (1, N) bias row once, then broadcast over M rows in the add.
    out = acc + BETA * bias_ref[...].astype(jnp.float32)
    o_ref[...] = out.astype(o_ref.dtype)


# ---------------------------------------------------------------------------
# Tiled path for real GEMM sizes: K-reduction grid axis, f32 accumulator in
# VMEM scratch, ALPHA/BETA applied only in the finalize step.
# ---------------------------------------------------------------------------
def _addmm_tiled_kernel(bias_ref, m1_ref, w_ref, o_ref, acc_ref):
    k = pl.program_id(2)

    @pl.when(k == 0)
    def _():
        acc_ref[...] = jnp.zeros_like(acc_ref)

    acc_ref[...] += jnp.dot(m1_ref[...], w_ref[...],
                            preferred_element_type=jnp.float32)

    @pl.when(k == pl.num_programs(2) - 1)
    def _():
        # Epilogue once per output tile, in f32, then a single downcast.
        out = ALPHA * acc_ref[...] + BETA * bias_ref[...].astype(jnp.float32)
        o_ref[...] = out.astype(o_ref.dtype)


def _addmm_impl(bias, m1, weight):
    """Pallas equivalent of torch.addmm(bias, m1, weight, beta=3, alpha=2)."""
    M, K = m1.shape
    K2, N = weight.shape
    assert K == K2, "inner dims must match"

    # TODO(synk): a (M, 1) bias (column broadcast) is not handled; only
    # (N,), (1, N) and (M, N) biases are supported here.
    bias2d = jnp.reshape(bias, (1, N)) if bias.ndim == 1 else bias
    rows_b = bias2d.shape[0]

    itemsize = jnp.dtype(m1.dtype).itemsize
    cost = pl.CostEstimate(
        flops=2 * M * N * K,
        transcendentals=0,
        bytes_accessed=itemsize * (M * K + K * N + M * N) + 4 * rows_b * N,
    )

    # 128-aligned tiles: lane-dense output, full MXU feeds, VMEM-safe on v7x.
    tm, tn, tk = 128, 128, 256
    use_tiled = (
        M % tm == 0 and N % tn == 0 and K % tk == 0 and rows_b in (1, M)
    )

    if not use_tiled:
        # Gridless single-block call: everything lives in VMEM as one tile.
        vmem = pl.BlockSpec(memory_space=pltpu.MemorySpace.VMEM)
        return pl.pallas_call(
            _addmm_small_kernel,
            out_shape=jax.ShapeDtypeStruct((M, N), m1.dtype),
            in_specs=[vmem, vmem, vmem],   # bias, m1, weight
            out_specs=vmem,
            cost_estimate=cost,
        )(bias2d, m1, weight)

    if rows_b == 1:
        bias_spec = pl.BlockSpec((1, tn), lambda i, j, k: (0, j))
    else:  # full (M, N) bias, tiled like the output
        bias_spec = pl.BlockSpec((tm, tn), lambda i, j, k: (i, j))

    grid = (M // tm, N // tn, K // tk)
    return pl.pallas_call(
        _addmm_tiled_kernel,
        out_shape=jax.ShapeDtypeStruct((M, N), m1.dtype),
        grid_spec=pltpu.PrefetchScalarGridSpec(
            num_scalar_prefetch=0,
            grid=grid,
            in_specs=[
                bias_spec,
                pl.BlockSpec((tm, tk), lambda i, j, k: (i, k)),
                pl.BlockSpec((tk, tn), lambda i, j, k: (k, j)),
            ],
            out_specs=pl.BlockSpec((tm, tn), lambda i, j, k: (i, j)),
            scratch_shapes=[pltpu.VMEM((tm, tn), jnp.float32)],
        ),
        compiler_params=pltpu.CompilerParams(
            dimension_semantics=("parallel", "parallel", "arbitrary")),
        cost_estimate=cost,
    )(bias2d, m1, weight)


# Jit the wrapper so the bias reshape fuses with the custom call instead of
# materializing as a separate tiny XLA op.
addmm = jax.jit(_addmm_impl)


if __name__ == "__main__":
    key = jax.random.PRNGKey(0)
    k_w, k_b, k_m, k_w2, k_b2, k_m2 = jax.random.split(key, 6)

    # --- Small shapes consistent with the module/test: m1 (8,16), weight
    #     (16,32), bias (32,).  Exercises the gridless single-block path.
    M, K, N = 8, 16, 32
    weight = jax.random.uniform(k_w, (K, N), dtype=jnp.float32)   # torch.rand
    bias = jax.random.uniform(k_b, (N,), dtype=jnp.float32)
    m1 = jax.random.uniform(k_m, (M, K), dtype=jnp.float32)

    out = jax.block_until_ready(addmm(bias, m1, weight))
    ref = BETA * bias[None, :] + ALPHA * jnp.matmul(
        m1, weight, precision=jax.lax.Precision.HIGHEST)
    assert out.shape == (M, N)
    assert jnp.allclose(out, ref, atol=1e-5, rtol=1e-5), "small-path mismatch"

    # --- Larger shapes exercising the tiled grid path (lane-dense 128-aligned
    #     output tiles, K-reduction with VMEM accumulator).
    M2, K2, N2 = 256, 512, 256
    weight2 = jax.random.uniform(k_w2, (K2, N2), dtype=jnp.float32)
    bias2 = jax.random.uniform(k_b2, (N2,), dtype=jnp.float32)
    m12 = jax.random.uniform(k_m2, (M2, K2), dtype=jnp.float32)

    out2 = jax.block_until_ready(addmm(bias2, m12, weight2))
    ref2 = BETA * bias2[None, :] + ALPHA * jnp.matmul(
        m12, weight2, precision=jax.lax.Precision.HIGHEST)
    assert out2.shape == (M2, N2)
    assert jnp.allclose(out2, ref2, atol=1e-3, rtol=1e-3), "tiled-path mismatch"

    print("KERNEL_OK")
</pallas_src>

<mosaic_0001>
module attributes {stable_mosaic.version = 11 : i64} {
  func.func @_addmm_small_kernel(%arg0: memref<1x32xf32, #tpu.memory_space<vmem>>, %arg1: memref<8x16xf32, #tpu.memory_space<vmem>>, %arg2: memref<16x32xf32, #tpu.memory_space<vmem>>, %arg3: memref<8x32xf32, #tpu.memory_space<vmem>>) attributes {dimension_semantics = [], scalar_prefetch = 0 : i64, scratch_operands = 0 : i64, tpu.core_type = #tpu.core_type<tc>} {
    %c0 = arith.constant 0 : index
    %c0_0 = arith.constant 0 : index
    %0 = vector.load %arg1[%c0, %c0_0] : memref<8x16xf32, #tpu.memory_space<vmem>>, vector<8x16xf32>
    %cst = arith.constant 2.000000e+00 : f32
    %1 = vector.broadcast %cst : f32 to vector<8x16xf32>
    %2 = arith.mulf %1, %0 : vector<8x16xf32>
    %c0_1 = arith.constant 0 : index
    %c0_2 = arith.constant 0 : index
    %3 = vector.load %arg2[%c0_1, %c0_2] : memref<16x32xf32, #tpu.memory_space<vmem>>, vector<16x32xf32>
    %cst_3 = arith.constant dense<0.000000e+00> : vector<8x32xf32>
    %4 = tpu.matmul %2, %3, %cst_3 {dimension_numbers = #tpu.dot_dimension_numbers<[1], [0], [0], [1], [0, 0, 1, 1], [], []>} : vector<8x16xf32>, vector<16x32xf32>, vector<8x32xf32> -> vector<8x32xf32>
    %c0_4 = arith.constant 0 : index
    %c0_5 = arith.constant 0 : index
    %5 = vector.load %arg0[%c0_4, %c0_5] : memref<1x32xf32, #tpu.memory_space<vmem>>, vector<1x32xf32>
    %cst_6 = arith.constant 3.000000e+00 : f32
    %6 = vector.broadcast %cst_6 : f32 to vector<1x32xf32>
    %7 = arith.mulf %6, %5 : vector<1x32xf32>
    %8 = vector.broadcast %7 : vector<1x32xf32> to vector<8x32xf32>
    %9 = arith.addf %4, %8 : vector<8x32xf32>
    %c0_7 = arith.constant 0 : index
    %c0_8 = arith.constant 0 : index
    %10 = vector.load %arg3[%c0_7, %c0_8] : memref<8x32xf32, #tpu.memory_space<vmem>>, vector<8x32xf32>
    tpu.vector_store %arg3[%c0_7, %c0_8], %9 {strides = array<i32>} : memref<8x32xf32, #tpu.memory_space<vmem>>, vector<8x32xf32>,
    return
  }
}

</mosaic_0001>

<llo_original>
// kernel: _addmm_impl.1
$region0: #{_addmm_impl.1}
  #allocation0 [shape = 'u32[]', space=smem, size = 0x4, offset = 0x4, fixed_abs, tag = 'smem constant byte address 0x4 - core index']
  #allocation1 [shape = 'u32[144,128]{1,0:T(1,128)}', space=vmem, size = 0x12000, scoped, tag = 'internal scratch']
  %s0 = inlined_call_operand.vmem [shape: f32[1,32], index: 0, kind: input, shape index: {}]
  %s1 = inlined_call_operand.hbm [shape: f32[8,16], index: 1, kind: input, shape index: {}]
  %s2 = inlined_call_operand.hbm [shape: f32[16,32], index: 2, kind: input, shape index: {}]
  %s3 = inlined_call_operand.hbm [shape: f32[8,32], index: 3, kind: output, shape index: {}]
  %s4 = sld [smem:[#allocation0]]
  $region30: #{_addmm_impl.1} parent=0
    _
  %s6 = ssub.s32 1, %s4
  %s7 = scalar_select 0, %s6, %s4
  $region1: #{_addmm_impl.1} parent=0
    #allocation2 [shape = 'u8[4096]{0}', space=vmem, size = 0x1000, scoped, tag = 'input window, operand 1, single buffered']
    #allocation3 [shape = 's32[1]{0}', space=sflag, size = 0x4, scoped, tag = 'scoped memory for _addmm_impl.1']
    #allocation4 [shape = 's32[1]{0}', space=sflag, size = 0x4, scoped, tag = 'scoped memory for _addmm_impl.1']
    #allocation5 [shape = 'u8[8192]{0}', space=vmem, size = 0x2000, scoped, tag = 'input window, operand 2, single buffered']
    #allocation6 [shape = 's32[1]{0}', space=sflag, size = 0x4, scoped, tag = 'scoped memory for _addmm_impl.1']
    #allocation7 [shape = 'u8[4096]{0}', space=vmem, size = 0x1000, scoped, tag = 'output window, operand 0, single buffered']
    %8 = vsyncpa [#allocation3], 0
    %9 = vsyncpa [#allocation6], 0
    %10 = vsyncpa [#allocation4], 0
    // Predicated region
    $region2: #{_addmm_impl.1} parent=1 // pred_check
      _
    $region3: #{_addmm_impl.1} parent=1 // pred_check_branch
      %12 = sbr.rel (0) target = $region5
    $region4: #{_addmm_impl.1} parent=1 // pred_region
      _
    $region5: #{_addmm_impl.1} parent=1 // pred_fallthru
      _
    // Predicated region
    $region6: #{_addmm_impl.1} parent=1 // pred_check
      _
    $region7: #{_addmm_impl.1} parent=1 // pred_check_branch
      %14 = sbr.rel (0) target = $region9
    $region8: #{_addmm_impl.1} parent=1 // pred_region
      %s16 = ssub.s32 128, 128
      %17 = vsyncadd [#allocation3], %s16
      %s19 = sshll.u32 [#allocation2], 4
      %s20 = int_to_ptr.vmem [resolvable:$true] %s19
      %22 = dma.hbm_to_vmem [thread:$0]  %s1, 128, %s20, [#allocation3]
    $region9: #{_addmm_impl.1} parent=1 // pred_fallthru
      _
    // Predicated region
    $region10: #{_addmm_impl.1} parent=1 // pred_check
      _
    $region11: #{_addmm_impl.1} parent=1 // pred_check_branch
      %24 = sbr.rel (0) target = $region13
    $region12: #{_addmm_impl.1} parent=1 // pred_region
      %s26 = ssub.s32 256, 256
      %27 = vsyncadd [#allocation6], %s26
      %s28 = sshll.u32 [#allocation5], 4
      %s29 = int_to_ptr.vmem [resolvable:$true] %s28
      %34 = dma.hbm_to_vmem [thread:$0]  %s2, 256, %s29, [#allocation6], 128, 128, 8
    $region13: #{_addmm_impl.1} parent=1 // pred_fallthru
      _
    // Predicated region
    $region14: #{_addmm_impl.1} parent=1 // pred_check
      _
    $region15: #{_addmm_impl.1} parent=1 // pred_check_branch
      %36 = sbr.rel (0) target = $region17
    $region16: #{_addmm_impl.1} parent=1 // pred_region
      %37 = dma.done [#allocation3], 128
    $region17: #{_addmm_impl.1} parent=1 // pred_fallthru
      _
    // Predicated region
    $region18: #{_addmm_impl.1} parent=1 // pred_check
      _
    $region19: #{_addmm_impl.1} parent=1 // pred_check_branch
      %39 = sbr.rel (0) target = $region21
    $region20: #{_addmm_impl.1} parent=1 // pred_region
      %40 = dma.done [#allocation6], 256
    $region21: #{_addmm_impl.1} parent=1 // pred_fallthru
      _
    %v41 = vld [vmem:[#allocation2] sm:$0xff]
    %v42 = vmul.f32 %v41, 2.0
    %v43 = vld [vmem:[#allocation5] sm:$0xff]
    %v44 = vld [vmem:[#allocation5 + $0x8] sm:$0xff]
    %v45 = vld [vmem:[%s0] sm:$0x1]
    %v46 = vmul.f32 %v45, 3.0
    %v48 = vlaneseq
    %v49 = vshrl.u32 %v48, 7
    %v50 = vsub.s32 0, %v49
    %v51 = vrot.slane %v46, %v50
    %vm53 = vcmask 130048
    %v55 = vsel %vm53, %v42, 0
    %57 = vmatprep.subr.mxu0 0.0
    %58 = vmatpush1.msra.mxu0 0.0
    %59 = vmatprep.subr.mxu0 0.0
    %60 = vmatpush1.msra.mxu0 0.0
    %61 = vmatprep.subr.mxu0 0.0
    %62 = vmatpush1.msra.mxu0 0.0
    %63 = vmatprep.subr.mxu0 0.0
    %64 = vmatpush1.msra.mxu0 0.0
    %65 = vmatprep.subr.mxu0 0.0
    %66 = vmatpush1.msra.mxu0 0.0
    %67 = vmatprep.subr.mxu0 0.0
    %68 = vmatpush1.msra.mxu0 0.0
    %69 = vmatprep.subr.mxu0 0.0
    %70 = vmatpush1.msra.mxu0 0.0
    %71 = vmatprep.subr.mxu0 0.0
    %72 = vmatpush1.msra.mxu0 0.0
    %73 = vmatprep.subr.mxu0 0.0
    %74 = vmatpush1.msra.mxu0 0.0
    %75 = vmatprep.subr.mxu0 0.0
    %76 = vmatpush1.msra.mxu0 0.0
    %77 = vmatprep.subr.mxu0 0.0
    %78 = vmatpush1.msra.mxu0 0.0
    %79 = vmatprep.subr.mxu0 0.0
    %80 = vmatpush1.msra.mxu0 0.0
    %81 = vmatprep.subr.mxu0 0.0
    %82 = vmatpush1.msra.mxu0 0.0
    %83 = vmatprep.subr.mxu0 0.0
    %84 = vmatpush1.msra.mxu0 0.0
    %85 = vmatprep.subr.mxu0 0.0
    %86 = vmatpush1.msra.mxu0 %v44
    %87 = vmatprep.subr.mxu0 0.0
    %88 = vmatpush1.msra.mxu0 %v43
    %89 = vmatprep.subr.mxu0 0.0
    %90 = vmatpush2.msra.mxu0 0.0
    %91 = vmatprep.subr.mxu0 0.0
    %92 = vmatpush2.msra.mxu0 0.0
    %93 = vmatprep.subr.mxu0 0.0
    %94 = vmatpush2.msra.mxu0 0.0
    %95 = vmatprep.subr.mxu0 0.0
    %96 = vmatpush2.msra.mxu0 0.0
    %97 = vmatprep.subr.mxu0 0.0
    %98 = vmatpush2.msra.mxu0 0.0
    %99 = vmatprep.subr.mxu0 0.0
    %100 = vmatpush2.msra.mxu0 0.0
    %101 = vmatprep.subr.mxu0 0.0
    %102 = vmatpush2.msra.mxu0 0.0
    %103 = vmatprep.subr.mxu0 0.0
    %104 = vmatpush2.msra.mxu0 0.0
    %105 = vmatprep.subr.mxu0 0.0
    %106 = vmatpush2.msra.mxu0 0.0
    %107 = vmatprep.subr.mxu0 0.0
    %108 = vmatpush2.msra.mxu0 0.0
    %109 = vmatprep.subr.mxu0 0.0
    %110 = vmatpush2.msra.mxu0 0.0
    %111 = vmatprep.subr.mxu0 0.0
    %112 = vmatpush2.msra.mxu0 0.0
    %113 = vmatprep.subr.mxu0 0.0
    %114 = vmatpush2.msra.mxu0 0.0
    %115 = vmatprep.subr.mxu0 0.0
    %116 = vmatpush2.msra.mxu0 0.0
    %117 = vmatprep.subr.mxu0 0.0
    %118 = vmatpush2.msra.mxu0 0.0
    %119 = vmatprep.subr.mxu0 0.0
    %120 = vmatpush2.msra.mxu0 0.0
    %121 = vmatprep.mubr.f32.mxu0 0.0
    %122 = vmatmul.mubr.f32.gmra.mxu0 %v55
    %v123 = vpop.f32.mrf.mxu0
    %v124 = vadd.f32 %v51, %v123
    %v125 = vpop.f32.mrf.mxu0
    %126 = vdwg.mxu0
    %vm127 = vcmask 261120
    %128 = vst.msk [vmem:[#allocation7] sm:$0xff] %vm127, %v124
    // Predicated region
    $region22: #{_addmm_impl.1} parent=1 // pred_check
      _
    $region23: #{_addmm_impl.1} parent=1 // pred_check_branch
      %130 = sbr.rel (0) target = $region25
    $region24: #{_addmm_impl.1} parent=1 // pred_region
      %s132 = ssub.s32 128, 128
      %133 = vsyncadd [#allocation4], %s132
      %s135 = sshll.u32 [#allocation7], 4
      %s136 = int_to_ptr.vmem [resolvable:$true] %s135
      %138 = dma.vmem_to_hbm [thread:$0]  %s136, 128, %s3, [#allocation4]
    $region25: #{_addmm_impl.1} parent=1 // pred_fallthru
      _
    // Predicated region
    $region26: #{_addmm_impl.1} parent=1 // pred_check
      _
    $region27: #{_addmm_impl.1} parent=1 // pred_check_branch
      %140 = sbr.rel (0) target = $region29
    $region28: #{_addmm_impl.1} parent=1 // pred_region
      %141 = dma.done [#allocation4], 128
    $region29: #{_addmm_impl.1} parent=1 // pred_fallthru
      _
    %142 = vsyncpa [#allocation3], 1
    %143 = vsyncpa [#allocation6], 1
    %144 = vsyncpa [#allocation4], 1

</llo_original>
